<compile_context>
chip_gen: v6e
topology: v6e:2x2x1
jax: 0.10.0
libtpu: 0.0.40
codegen_flags: <defaults>
</compile_context>

<pallas_src>
import jax
import jax.numpy as jnp
from jax.experimental import pallas as pl
from jax.experimental.pallas import tpu as pltpu


_MIB = 1024 * 1024


def _round_up(x, m):
    return (x + m - 1) // m * m


def _chip_info():
    """(num_tensorcores, vmem_bytes_per_tc) with conservative fallbacks."""
    n_tc, vmem = 1, 128 * _MIB            # v5e / v6e: 1 TC, 128 MiB VMEM
    try:
        kind = jax.devices()[0].device_kind.lower()
        if "v7" in kind or "7x" in kind:
            n_tc, vmem = 2, 64 * _MIB     # v7x: 2 TCs, 64 MiB VMEM per TC
    except Exception:
        vmem = 64 * _MIB                  # unknown chip: be conservative on VMEM
    return n_tc, vmem


# ---------------------------------------------------------------------------
# Kernels
# ---------------------------------------------------------------------------
def fusion_sum_kernel(sp_ref, ca_ref, o_ref):
    # Pure VPU elementwise add on a lane-dense (tm, 128) tile.
    o_ref[...] = sp_ref[...] + ca_ref[...]


def _make_cat_kernel(matmul_dtype):
    def kernel(sp_ref, ca_ref, wsp_ref, wca_ref, b_ref, o_ref):
        # out(C, T) = W[:, :C] @ sp(C, T) + W[:, C:] @ ca(C, T) + b(C, 1)
        # (== 1x1 conv over the channel-concat of sp and ca).
        w_sp = wsp_ref[...]
        w_ca = wca_ref[...]
        if matmul_dtype is not None:
            # In-kernel cast: no extra HBM pass, cast hides under the MXU.
            w_sp = w_sp.astype(matmul_dtype)
            w_ca = w_ca.astype(matmul_dtype)
        bias = b_ref[...]                       # (C, 1), f32
        nb = sp_ref.shape[0]
        for i in range(nb):                     # static unroll over batch samples
            sp = sp_ref[i]
            ca = ca_ref[i]
            if matmul_dtype is not None:
                sp = sp.astype(matmul_dtype)
                ca = ca.astype(matmul_dtype)
            acc = jnp.dot(w_sp, sp, preferred_element_type=jnp.float32)
            acc = acc + jnp.dot(w_ca, ca, preferred_element_type=jnp.float32)
            o_ref[i] = (acc + bias).astype(o_ref.dtype)
    return kernel


# ---------------------------------------------------------------------------
# Wrappers
# ---------------------------------------------------------------------------
def fusion_block_sum(sp_block, ca_block):
    """fusion_type='sum': out = sp + ca on a flat lane-dense view (no transposes)."""
    assert sp_block.shape == ca_block.shape
    orig_shape = sp_block.shape
    total = sp_block.size
    itemsize = sp_block.dtype.itemsize
    lanes = 128

    n_tc, vmem = _chip_info()

    # Pad only to a multiple of 8*128 (needed for the (rows, 128) reshape);
    # the common case (feature-map sizes divisible by 1024) needs no pad/slice.
    pad_to = _round_up(total, 8 * lanes)
    rows = pad_to // lanes

    # Row tile: one big tile on 1-TC chips; 2-way split on v7x only when each
    # half keeps >= 512 rows.  Clamp by the VMEM budget (3 arrays x 2 buffers).
    max_rows = 4096 if n_tc >= 2 else 8192
    budget = int(vmem * 0.6)
    rows_budget = max(8, (budget // (6 * lanes * itemsize)) // 8 * 8)
    max_rows = min(max_rows, rows_budget)
    if n_tc >= 2 and rows >= 1024:
        tm = min(max_rows, _round_up(pl.cdiv(rows, 2), 8))
    else:
        tm = min(max_rows, _round_up(rows, 8))
    tm = max(8, tm)
    grid_m = pl.cdiv(rows, tm)

    footprint = 3 * 2 * tm * lanes * itemsize
    vmem_limit = int(min(vmem - 8 * _MIB, max(2 * footprint, 16 * _MIB)))

    sp_flat = sp_block.reshape(-1)
    ca_flat = ca_block.reshape(-1)
    if pad_to != total:
        sp_flat = jnp.pad(sp_flat, (0, pad_to - total))
        ca_flat = jnp.pad(ca_flat, (0, pad_to - total))
    sp2 = sp_flat.reshape(rows, lanes)
    ca2 = ca_flat.reshape(rows, lanes)

    out2 = pl.pallas_call(
        fusion_sum_kernel,
        out_shape=jax.ShapeDtypeStruct((rows, lanes), sp_block.dtype),
        grid_spec=pltpu.PrefetchScalarGridSpec(
            num_scalar_prefetch=0,
            grid=(grid_m,),
            in_specs=[
                pl.BlockSpec((tm, lanes), lambda i: (i, 0)),
                pl.BlockSpec((tm, lanes), lambda i: (i, 0)),
            ],
            out_specs=pl.BlockSpec((tm, lanes), lambda i: (i, 0)),
        ),
        compiler_params=pltpu.CompilerParams(
            dimension_semantics=("parallel",),
            vmem_limit_bytes=vmem_limit,
        ),
    )(sp2, ca2)

    out_flat = out2.reshape(-1)
    if pad_to != total:
        out_flat = out_flat[:total]
    return out_flat.reshape(orig_shape)


def fusion_block_cat(sp_block, ca_block, conv_w, conv_b, *, matmul_dtype=None):
    """fusion_type='cat': 1x1 conv over channel-concat, lane-dense on H*W.

    conv_w: (C, 2C, 1, 1) PyTorch Conv2d weight; conv_b: (C,) bias.
    matmul_dtype: optionally jnp.bfloat16 for large C (in-kernel cast, f32 accum).
    """
    assert sp_block.shape == ca_block.shape
    n, c, h, w = sp_block.shape
    hw = h * w
    out_dtype = sp_block.dtype
    itemsize = sp_block.dtype.itemsize

    n_tc, vmem = _chip_info()

    # NCHW is already channels-first: (N, C, H*W) is a free reshape.  No padding;
    # the ragged last lane block is masked (contraction is over C only, so
    # garbage tail columns never contaminate valid output columns).
    sp3 = sp_block.reshape(n, c, hw)
    ca3 = ca_block.reshape(n, c, hw)

    w2d = conv_w[:, :, 0, 0]            # (C, 2C)
    w_sp = w2d[:, :c]                   # applied to the sp half of the concat
    w_ca = w2d[:, c:]                   # applied to the ca half of the concat
    bias = conv_b.reshape(c, 1).astype(jnp.float32)

    # Block several batch samples per grid step when the feature map is tiny,
    # to amortize per-step overhead and avoid many tiny DMAs.
    hw128 = _round_up(hw, 128)
    nb = min(n, 8) if (hw128 <= 256 and n >= 4) else 1

    # Spatial tile on the lane axis: multiple of 128, derived from the VMEM
    # budget, capped lower on v7x (64 MiB per TC).
    budget = int(vmem * 0.6)
    t_hw_budget = max(128, (budget // (6 * nb * c * itemsize)) // 128 * 128)
    cap = 2048 if n_tc >= 2 else 4096
    t_hw = min(cap, t_hw_budget, hw128)

    # v7x: make sure the 2nd TensorCore gets work on small-batch shapes.
    if n_tc >= 2 and pl.cdiv(n, nb) == 1 and pl.cdiv(hw, t_hw) < 2 and hw > 128:
        t_hw = _round_up(pl.cdiv(hw, 2), 128)

    grid = (pl.cdiv(n, nb), pl.cdiv(hw, t_hw))

    footprint = (3 * 2 * nb * c * t_hw * itemsize            # sp/ca/out, double buffered
                 + 2 * 2 * c * c * conv_w.dtype.itemsize     # weight halves
                 + 2 * c * 4)                                # bias
    vmem_limit = int(min(vmem - 8 * _MIB, max(2 * footprint, 16 * _MIB)))

    out3 = pl.pallas_call(
        _make_cat_kernel(matmul_dtype),
        out_shape=jax.ShapeDtypeStruct((n, c, hw), out_dtype),
        grid_spec=pltpu.PrefetchScalarGridSpec(
            num_scalar_prefetch=0,
            grid=grid,
            in_specs=[
                pl.BlockSpec((nb, c, t_hw), lambda b, j: (b, 0, j)),
                pl.BlockSpec((nb, c, t_hw), lambda b, j: (b, 0, j)),
                # Tiny constant weight/bias blocks, resident across all steps.
                pl.BlockSpec((c, c), lambda b, j: (0, 0)),
                pl.BlockSpec((c, c), lambda b, j: (0, 0)),
                pl.BlockSpec((c, 1), lambda b, j: (0, 0)),
            ],
            out_specs=pl.BlockSpec((nb, c, t_hw), lambda b, j: (b, 0, j)),
        ),
        compiler_params=pltpu.CompilerParams(
            dimension_semantics=("parallel", "parallel"),
            vmem_limit_bytes=vmem_limit,
        ),
    )(sp3, ca3, w_sp, w_ca, bias)

    return out3.reshape(n, c, h, w)


# ---------------------------------------------------------------------------
# Reference (plain JAX) for correctness check
# ---------------------------------------------------------------------------
def ref_sum(sp, ca):
    return sp + ca


def ref_cat(sp, ca, w, b):
    fused = jnp.concatenate((sp, ca), axis=1)                 # NCHW concat on C
    out = jnp.einsum("nihw,oi->nohw", fused, w[:, :, 0, 0])
    return out + b.reshape(1, -1, 1, 1)


if __name__ == "__main__":
    key = jax.random.PRNGKey(0)
    k1, k2, k3, k4, k5, k6 = jax.random.split(key, 6)

    N, C, H, W = 2, 4, 16, 16
    sp = jax.random.normal(k1, (N, C, H, W), dtype=jnp.float32)
    ca = jax.random.normal(k2, (N, C, H, W), dtype=jnp.float32)

    # Deterministic Conv2d(2C -> C, kernel_size=1) params
    conv_w = jax.random.normal(k3, (C, 2 * C, 1, 1), dtype=jnp.float32) * 0.1
    conv_b = jax.random.normal(k4, (C,), dtype=jnp.float32) * 0.1

    # fusion_type='sum'
    out_sum = jax.block_until_ready(fusion_block_sum(sp, ca))
    assert jnp.allclose(out_sum, ref_sum(sp, ca), atol=1e-5), "sum mismatch"

    # fusion_type='cat'
    out_cat = jax.block_until_ready(fusion_block_cat(sp, ca, conv_w, conv_b))
    assert jnp.allclose(out_cat, ref_cat(sp, ca, conv_w, conv_b), atol=1e-4), "cat mismatch"

    # Ragged spatial shape: exercises the masked (un-padded) last lane block.
    sp_odd = jax.random.normal(k5, (1, C, 5, 7), dtype=jnp.float32)
    ca_odd = jax.random.normal(k6, (1, C, 5, 7), dtype=jnp.float32)
    out_sum_odd = jax.block_until_ready(fusion_block_sum(sp_odd, ca_odd))
    assert jnp.allclose(out_sum_odd, ref_sum(sp_odd, ca_odd), atol=1e-5), "odd sum mismatch"
    out_cat_odd = jax.block_until_ready(fusion_block_cat(sp_odd, ca_odd, conv_w, conv_b))
    assert jnp.allclose(out_cat_odd, ref_cat(sp_odd, ca_odd, conv_w, conv_b), atol=1e-4), "odd cat mismatch"

    # Small feature map + larger batch: exercises the batch-blocked path (nb > 1).
    k7, k8 = jax.random.split(k6)
    sp_b = jax.random.normal(k7, (8, C, 8, 8), dtype=jnp.float32)
    ca_b = jax.random.normal(k8, (8, C, 8, 8), dtype=jnp.float32)
    out_cat_b = jax.block_until_ready(fusion_block_cat(sp_b, ca_b, conv_w, conv_b))
    assert jnp.allclose(out_cat_b, ref_cat(sp_b, ca_b, conv_w, conv_b), atol=1e-4), "batched cat mismatch"

    print("KERNEL_OK")
</pallas_src>

<mosaic_0001>
module attributes {stable_mosaic.version = 11 : i64} {
  func.func @fusion_sum_kernel(%arg0: i32, %arg1: memref<16x128xf32, #tpu.memory_space<vmem>>, %arg2: memref<16x128xf32, #tpu.memory_space<vmem>>, %arg3: memref<16x128xf32, #tpu.memory_space<vmem>>) attributes {dimension_semantics = [#tpu.dimension_semantics<parallel>], iteration_bounds = array<i64: 1>, scalar_prefetch = 0 : i64, scratch_operands = 0 : i64, tpu.core_type = #tpu.core_type<tc>, window_params = [{transform_indices = @transform_0, window_bounds = array<i64: 16, 128>}, {transform_indices = @transform_1, window_bounds = array<i64: 16, 128>}, {transform_indices = @transform_2, window_bounds = array<i64: 16, 128>}]} {
    %c0 = arith.constant 0 : index
    %c0_0 = arith.constant 0 : index
    %0 = vector.load %arg1[%c0, %c0_0] : memref<16x128xf32, #tpu.memory_space<vmem>>, vector<16x128xf32>
    %c0_1 = arith.constant 0 : index
    %c0_2 = arith.constant 0 : index
    %1 = vector.load %arg2[%c0_1, %c0_2] : memref<16x128xf32, #tpu.memory_space<vmem>>, vector<16x128xf32>
    %2 = arith.addf %0, %1 : vector<16x128xf32>
    %c0_3 = arith.constant 0 : index
    %c0_4 = arith.constant 0 : index
    %3 = vector.load %arg3[%c0_3, %c0_4] : memref<16x128xf32, #tpu.memory_space<vmem>>, vector<16x128xf32>
    tpu.vector_store %arg3[%c0_3, %c0_4], %2 {strides = array<i32>} : memref<16x128xf32, #tpu.memory_space<vmem>>, vector<16x128xf32>,
    return
  }
  func.func @transform_0(%arg0: i32) -> (i32, i32) {
    %c0_i32 = arith.constant 0 : i32
    %c0_i32_0 = arith.constant 0 : i32
    return %arg0, %c0_i32 : i32, i32
  }
  func.func @transform_1(%arg0: i32) -> (i32, i32) {
    %c0_i32 = arith.constant 0 : i32
    %c0_i32_0 = arith.constant 0 : i32
    return %arg0, %c0_i32 : i32, i32
  }
  func.func @transform_2(%arg0: i32) -> (i32, i32) {
    %c0_i32 = arith.constant 0 : i32
    %c0_i32_0 = arith.constant 0 : i32
    return %arg0, %c0_i32 : i32, i32
  }
}

</mosaic_0001>

<llo_original>
// kernel: tpu_custom_call.1
$region0: #{tpu_custom_call.1}
  #allocation0 [shape = 'u32[]', space=smem, size = 0x4, offset = 0x4, fixed_abs, tag = 'smem constant byte address 0x4 - core index']
  #allocation1 [shape = 'u32[144,128]{1,0:T(1,128)}', space=vmem, size = 0x12000, scoped, tag = 'internal scratch']
  %s0 = inlined_call_operand.hbm [shape: f32[16,128], index: 0, kind: input, shape index: {}]
  %s1 = inlined_call_operand.hbm [shape: f32[16,128], index: 1, kind: input, shape index: {}]
  %s2 = inlined_call_operand.hbm [shape: f32[16,128], index: 2, kind: output, shape index: {}]
  %s3 = sld [smem:[#allocation0]]
  $region26: #{tpu_custom_call.1} parent=0
    _
  %s5 = ssub.s32 1, %s3
  %s6 = scalar_select 0, %s5, %s3
  $region1: #{tpu_custom_call.1} parent=0
    #allocation2 [shape = 'u8[8192]{0}', space=vmem, size = 0x2000, scoped, tag = 'input window, operand 0, single buffered']
    #allocation3 [shape = 's32[1]{0}', space=sflag, size = 0x4, scoped, tag = 'scoped memory for tpu_custom_call.1']
    #allocation4 [shape = 's32[1]{0}', space=sflag, size = 0x4, scoped, tag = 'scoped memory for tpu_custom_call.1']
    #allocation5 [shape = 'u8[8192]{0}', space=vmem, size = 0x2000, scoped, tag = 'input window, operand 1, single buffered']
    #allocation6 [shape = 's32[1]{0}', space=sflag, size = 0x4, scoped, tag = 'scoped memory for tpu_custom_call.1']
    #allocation7 [shape = 'u8[8192]{0}', space=vmem, size = 0x2000, scoped, tag = 'output window, operand 0, single buffered']
    %7 = vsyncpa [#allocation3], 0
    %8 = vsyncpa [#allocation6], 0
    %9 = vsyncpa [#allocation4], 0
    // Predicated region
    $region2: #{tpu_custom_call.1} parent=1 // pred_check
      _
    $region3: #{tpu_custom_call.1} parent=1 // pred_check_branch
      %11 = sbr.rel (0) target = $region5
    $region4: #{tpu_custom_call.1} parent=1 // pred_region
      %s13 = ssub.s32 256, 256
      %14 = vsyncadd [#allocation3], %s13
      %s15 = sshll.u32 [#allocation2], 4
      %s16 = int_to_ptr.vmem [resolvable:$true] %s15
      %21 = dma.hbm_to_vmem [thread:$0]  %s0, 256, %s16, [#allocation3], 128, 128, 8
    $region5: #{tpu_custom_call.1} parent=1 // pred_fallthru
      _
    // Predicated region
    $region6: #{tpu_custom_call.1} parent=1 // pred_check
      _
    $region7: #{tpu_custom_call.1} parent=1 // pred_check_branch
      %23 = sbr.rel (0) target = $region9
    $region8: #{tpu_custom_call.1} parent=1 // pred_region
      %s25 = ssub.s32 256, 256
      %26 = vsyncadd [#allocation6], %s25
      %s27 = sshll.u32 [#allocation5], 4
      %s28 = int_to_ptr.vmem [resolvable:$true] %s27
      %33 = dma.hbm_to_vmem [thread:$0]  %s1, 256, %s28, [#allocation6], 128, 128, 8
    $region9: #{tpu_custom_call.1} parent=1 // pred_fallthru
      _
    // Predicated region
    $region10: #{tpu_custom_call.1} parent=1 // pred_check
      _
    $region11: #{tpu_custom_call.1} parent=1 // pred_check_branch
      %35 = sbr.rel (0) target = $region13
    $region12: #{tpu_custom_call.1} parent=1 // pred_region
      %36 = dma.done [#allocation3], 256
    $region13: #{tpu_custom_call.1} parent=1 // pred_fallthru
      _
    // Predicated region
    $region14: #{tpu_custom_call.1} parent=1 // pred_check
      _
    $region15: #{tpu_custom_call.1} parent=1 // pred_check_branch
      %38 = sbr.rel (0) target = $region17
    $region16: #{tpu_custom_call.1} parent=1 // pred_region
      %39 = dma.done [#allocation6], 256
    $region17: #{tpu_custom_call.1} parent=1 // pred_fallthru
      _
    %v40 = vld [vmem:[#allocation2] sm:$0xff]
    %v41 = vld [vmem:[#allocation2 + $0x8] sm:$0xff]
    %v42 = vld [vmem:[#allocation5] sm:$0xff]
    %v43 = vld [vmem:[#allocation5 + $0x8] sm:$0xff]
    %v44 = vadd.f32 %v40, %v42
    %v45 = vadd.f32 %v41, %v43
    %46 = vst [vmem:[#allocation7] sm:$0xff] %v44
    %47 = vst [vmem:[#allocation7 + $0x8] sm:$0xff] %v45
    // Predicated region
    $region18: #{tpu_custom_call.1} parent=1 // pred_check
      _
    $region19: #{tpu_custom_call.1} parent=1 // pred_check_branch
      %49 = sbr.rel (0) target = $region21
    $region20: #{tpu_custom_call.1} parent=1 // pred_region
      %s51 = ssub.s32 256, 256
      %52 = vsyncadd [#allocation4], %s51
      %s53 = sshll.u32 [#allocation7], 4
      %s54 = int_to_ptr.vmem [resolvable:$true] %s53
      %59 = dma.vmem_to_hbm [thread:$0]  %s54, 256, %s2, [#allocation4], 128, 128, 8
    $region21: #{tpu_custom_call.1} parent=1 // pred_fallthru
      _
    // Predicated region
    $region22: #{tpu_custom_call.1} parent=1 // pred_check
      _
    $region23: #{tpu_custom_call.1} parent=1 // pred_check_branch
      %61 = sbr.rel (0) target = $region25
    $region24: #{tpu_custom_call.1} parent=1 // pred_region
      %62 = dma.done [#allocation4], 256
    $region25: #{tpu_custom_call.1} parent=1 // pred_fallthru
      _
    %63 = vsyncpa [#allocation3], 1
    %64 = vsyncpa [#allocation6], 1
    %65 = vsyncpa [#allocation4], 1

</llo_original>
